<compile_context>
chip_gen: v5e
topology: v5e:2x2
jax: 0.10.0
libtpu: 0.0.40
codegen_flags: <defaults>
</compile_context>

<pallas_src>
import jax
import jax.numpy as jnp
from jax.experimental import pallas as pl
from jax.experimental.pallas import tpu as pltpu


NEG_SLOPE = 0.01  # nn.LeakyReLU default

# Fixed architecture of the Assess module (defaults from the PyTorch spec).
PARAM_DIM = 6
HIDDEN = (64, 32, 16)
DIMS = (PARAM_DIM,) + HIDDEN + (1,)          # (6, 64, 32, 16, 1)
N_LAYERS = len(DIMS) - 1                     # 4 linear layers

MAX_TILE_B = 2048       # large tile -> few grid steps; fits all VMEM budgets
_SPLIT_MIN_B = 512      # below this a single grid step beats a megacore split


def _round_up(n, m):
    return -(-n // m) * m


# Sublane-aligned row offsets of each weight inside the packed bf16 slab.
# Hidden layers stored as [d_in, d_out]; the final [16,1] layer is stored
# transposed as a lane-dense [1, 16] row (it is applied on the VPU, not MXU).
_W_ROWS = []
_off = 0
for _li in range(N_LAYERS):
    _W_ROWS.append(_off)
    _rows = DIMS[_li] if _li < N_LAYERS - 1 else 1
    _off += _round_up(_rows, 16)             # bf16 sublane-tile alignment
W_PACK_ROWS = _off                           # 16 + 64 + 32 + 16 = 128
W_PACK_COLS = max(DIMS[1:-1])                # 64


def _assess_kernel(x1_ref, x2_ref, w_ref, b_ref, o_ref):
    """Fused MLP for both inputs: 3 bf16 matmuls + LeakyReLU + VPU head + sigmoid."""
    tb = x1_ref.shape[0]
    # Stack the two score paths along the batch (sublane) axis.
    h = jnp.concatenate([x1_ref[...], x2_ref[...]], axis=0)        # [2*tb, 6] f32

    # Hidden layers: bf16 MXU matmuls with f32 accumulation, f32 epilogue.
    for li in range(N_LAYERS - 1):
        d_in, d_out = DIMS[li], DIMS[li + 1]
        r0 = _W_ROWS[li]
        w = w_ref[r0:r0 + d_in, 0:d_out]                           # bf16 [d_in, d_out]
        b = b_ref[li:li + 1, 0:d_out]                              # f32  [1, d_out]
        h = jnp.dot(h.astype(jnp.bfloat16), w,
                    preferred_element_type=jnp.float32) + b
        h = jnp.where(h >= 0, h, NEG_SLOPE * h)                    # LeakyReLU

    # Final 16 -> 1 layer off the MXU: broadcast-mul (VPU) + lane reduce (XLU).
    r0 = _W_ROWS[N_LAYERS - 1]
    w_last = w_ref[r0:r0 + 1, 0:DIMS[-2]].astype(jnp.float32)      # [1, 16]
    b_last = b_ref[N_LAYERS - 1:N_LAYERS, 0:1]                     # [1, 1]
    logit = jnp.sum(h * w_last, axis=-1, keepdims=True) + b_last   # [2*tb, 1]

    # Exact sigmoid: exp on the EUP, exact reciprocal.
    s = pl.reciprocal(1.0 + jnp.exp(-logit), approx=False)         # [2*tb, 1]
    o_ref[...] = jnp.concatenate([s[:tb], s[tb:]], axis=1)         # [tb, 2]


def pack_params(params):
    """Pack 4 (w, b) pairs into one bf16 weight slab + one f32 bias slab."""
    w_pack = jnp.zeros((W_PACK_ROWS, W_PACK_COLS), jnp.bfloat16)
    b_pack = jnp.zeros((N_LAYERS, W_PACK_COLS), jnp.float32)
    for li, (w, b) in enumerate(params):
        d_in, d_out = DIMS[li], DIMS[li + 1]
        r0 = _W_ROWS[li]
        if li < N_LAYERS - 1:
            w_pack = w_pack.at[r0:r0 + d_in, 0:d_out].set(w.astype(jnp.bfloat16))
        else:
            # Final [16, 1] layer stored transposed as a lane-dense [1, 16] row.
            w_pack = w_pack.at[r0:r0 + 1, 0:d_in].set(w.T.astype(jnp.bfloat16))
        b_pack = b_pack.at[li, 0:d_out].set(b.reshape(-1).astype(jnp.float32))
    return w_pack, b_pack


def _choose_tile_b(B):
    """Batch tile: full extent for small B, else >=2 steps capped at MAX_TILE_B."""
    if B <= _SPLIT_MIN_B:
        return B                              # one step; block == full array extent
    half = _round_up((B + 1) // 2, 8)         # >=2 steps keeps both v7x TCs busy
    return min(MAX_TILE_B, half)


def assess_forward(x1, x2, w_pack, b_pack):
    """Equivalent of Assess.forward((x1, x2)) -> (s1, s2), each shape [B]."""
    B, D = x1.shape
    tile_b = _choose_tile_b(B)
    grid = (pl.cdiv(B, tile_b),)

    flops = 2 * (2 * B) * sum(DIMS[i] * DIMS[i + 1] for i in range(N_LAYERS))
    bytes_accessed = (2 * B * D * 4 + B * 2 * 4
                      + W_PACK_ROWS * W_PACK_COLS * 2
                      + N_LAYERS * W_PACK_COLS * 4)

    out = pl.pallas_call(
        _assess_kernel,
        out_shape=jax.ShapeDtypeStruct((B, 2), jnp.float32),
        grid=grid,
        in_specs=[
            pl.BlockSpec((tile_b, D), lambda i: (i, 0)),
            pl.BlockSpec((tile_b, D), lambda i: (i, 0)),
            pl.BlockSpec((W_PACK_ROWS, W_PACK_COLS), lambda i: (0, 0)),
            pl.BlockSpec((N_LAYERS, W_PACK_COLS), lambda i: (0, 0)),
        ],
        out_specs=pl.BlockSpec((tile_b, 2), lambda i: (i, 0)),
        compiler_params=pltpu.CompilerParams(
            dimension_semantics=("parallel",),
            vmem_limit_bytes=48 * 1024 * 1024),
        cost_estimate=pl.CostEstimate(
            flops=flops, transcendentals=2 * B, bytes_accessed=bytes_accessed),
    )(x1, x2, w_pack, b_pack)
    return out[:, 0], out[:, 1]


def init_params(key, param_dim=PARAM_DIM, linear_list=HIDDEN):
    """Xavier-uniform weights ([in, out] layout), bias filled with 0.01."""
    dims = [param_dim] + list(linear_list) + [1]
    params = []
    for i in range(len(dims) - 1):
        fan_in, fan_out = dims[i], dims[i + 1]
        key, sub = jax.random.split(key)
        bound = jnp.sqrt(6.0 / (fan_in + fan_out))
        w = jax.random.uniform(sub, (fan_in, fan_out), jnp.float32,
                               minval=-bound, maxval=bound)
        b = jnp.full((1, fan_out), 0.01, dtype=jnp.float32)
        params.append((w, b))
    return params


def assess_reference(x1, x2, params):
    """Pure-JAX f32 reference of the PyTorch forward (eval semantics)."""
    def mlp(x):
        h = x
        for i, (w, b) in enumerate(params):
            h = h @ w + b
            if i < len(params) - 1:
                h = jnp.where(h >= 0, h, NEG_SLOPE * h)
        return jax.nn.sigmoid(h)
    return jnp.squeeze(mlp(x1), -1), jnp.squeeze(mlp(x2), -1)


if __name__ == "__main__":
    key = jax.random.PRNGKey(0)
    pkey, xkey1, xkey2 = jax.random.split(key, 3)

    batch = 8
    params = init_params(pkey)
    w_pack, b_pack = pack_params(params)

    x1 = jax.random.normal(xkey1, (batch, PARAM_DIM), dtype=jnp.float32)
    x2 = jax.random.normal(xkey2, (batch, PARAM_DIM), dtype=jnp.float32)

    fwd = jax.jit(assess_forward)
    s1, s2 = fwd(x1, x2, w_pack, b_pack)
    jax.block_until_ready((s1, s2))

    # Validate against the f32 reference (bf16 matmul operands -> modest tol).
    r1, r2 = assess_reference(x1, x2, params)
    assert s1.shape == (batch,) and s2.shape == (batch,)
    assert bool(jnp.all(jnp.abs(s1 - r1) < 5e-3))
    assert bool(jnp.all(jnp.abs(s2 - r2) < 5e-3))
    assert bool(jnp.all((s1 >= 0.0) & (s1 <= 1.0)))
    assert bool(jnp.all((s2 >= 0.0) & (s2 <= 1.0)))

    print("KERNEL_OK")
</pallas_src>

<mosaic_0001>
module attributes {stable_mosaic.version = 11 : i64} {
  func.func @_assess_kernel(%arg0: i32, %arg1: memref<8x6xf32, #tpu.memory_space<vmem>>, %arg2: memref<8x6xf32, #tpu.memory_space<vmem>>, %arg3: memref<128x64xbf16, #tpu.memory_space<vmem>>, %arg4: memref<4x64xf32, #tpu.memory_space<vmem>>, %arg5: memref<8x2xf32, #tpu.memory_space<vmem>>) attributes {dimension_semantics = [#tpu.dimension_semantics<parallel>], iteration_bounds = array<i64: 1>, scalar_prefetch = 0 : i64, scratch_operands = 0 : i64, tpu.core_type = #tpu.core_type<tc>, window_params = [{transform_indices = @transform_0, window_bounds = array<i64: 8, 6>}, {transform_indices = @transform_1, window_bounds = array<i64: 8, 6>}, {pipeline_mode = #tpu.pipeline_mode<synchronous>, transform_indices = @transform_2, window_bounds = array<i64: 128, 64>}, {pipeline_mode = #tpu.pipeline_mode<synchronous>, transform_indices = @transform_3, window_bounds = array<i64: 4, 64>}, {transform_indices = @transform_4, window_bounds = array<i64: 8, 2>}]} {
    %c0 = arith.constant 0 : index
    %c0_0 = arith.constant 0 : index
    %0 = vector.load %arg1[%c0, %c0_0] : memref<8x6xf32, #tpu.memory_space<vmem>>, vector<8x6xf32>
    %c0_1 = arith.constant 0 : index
    %c0_2 = arith.constant 0 : index
    %1 = vector.load %arg2[%c0_1, %c0_2] : memref<8x6xf32, #tpu.memory_space<vmem>>, vector<8x6xf32>
    %2 = tpu.concatenate %0, %1 in 0 : vector<8x6xf32>, vector<8x6xf32> -> vector<16x6xf32>
    %c0_3 = arith.constant 0 : index
    %c0_4 = arith.constant 0 : index
    %3 = vector.load %arg3[%c0_3, %c0_4] : memref<128x64xbf16, #tpu.memory_space<vmem>>, vector<6x64xbf16>
    %c0_5 = arith.constant 0 : index
    %c0_6 = arith.constant 0 : index
    %4 = vector.load %arg4[%c0_5, %c0_6] : memref<4x64xf32, #tpu.memory_space<vmem>>, vector<1x64xf32>
    %5 = arith.truncf %2 : vector<16x6xf32> to vector<16x6xbf16>
    %cst = arith.constant dense<0.000000e+00> : vector<16x64xf32>
    %6 = tpu.matmul %5, %3, %cst {dimension_numbers = #tpu.dot_dimension_numbers<[1], [0], [0], [1], [0, 0, 1, 1], [], []>} : vector<16x6xbf16>, vector<6x64xbf16>, vector<16x64xf32> -> vector<16x64xf32>
    %7 = vector.broadcast %4 : vector<1x64xf32> to vector<16x64xf32>
    %8 = arith.addf %6, %7 : vector<16x64xf32>
    %cst_7 = arith.constant 0.000000e+00 : f32
    %9 = vector.broadcast %cst_7 : f32 to vector<16x64xf32>
    %10 = arith.cmpf oge, %8, %9 : vector<16x64xf32>
    %cst_8 = arith.constant 0.00999999977 : f32
    %11 = vector.broadcast %cst_8 : f32 to vector<16x64xf32>
    %12 = arith.mulf %11, %8 : vector<16x64xf32>
    %13 = arith.select %10, %8, %12 : vector<16x64xi1>, vector<16x64xf32>
    %c16 = arith.constant 16 : index
    %c0_9 = arith.constant 0 : index
    %14 = vector.load %arg3[%c16, %c0_9] : memref<128x64xbf16, #tpu.memory_space<vmem>>, vector<64x32xbf16>
    %c1 = arith.constant 1 : index
    %c0_10 = arith.constant 0 : index
    %15 = vector.load %arg4[%c1, %c0_10] : memref<4x64xf32, #tpu.memory_space<vmem>>, vector<1x32xf32>
    %16 = arith.truncf %13 : vector<16x64xf32> to vector<16x64xbf16>
    %cst_11 = arith.constant dense<0.000000e+00> : vector<16x32xf32>
    %17 = tpu.matmul %16, %14, %cst_11 {dimension_numbers = #tpu.dot_dimension_numbers<[1], [0], [0], [1], [0, 0, 1, 1], [], []>} : vector<16x64xbf16>, vector<64x32xbf16>, vector<16x32xf32> -> vector<16x32xf32>
    %18 = vector.broadcast %15 : vector<1x32xf32> to vector<16x32xf32>
    %19 = arith.addf %17, %18 : vector<16x32xf32>
    %cst_12 = arith.constant 0.000000e+00 : f32
    %20 = vector.broadcast %cst_12 : f32 to vector<16x32xf32>
    %21 = arith.cmpf oge, %19, %20 : vector<16x32xf32>
    %cst_13 = arith.constant 0.00999999977 : f32
    %22 = vector.broadcast %cst_13 : f32 to vector<16x32xf32>
    %23 = arith.mulf %22, %19 : vector<16x32xf32>
    %24 = arith.select %21, %19, %23 : vector<16x32xi1>, vector<16x32xf32>
    %c80 = arith.constant 80 : index
    %c0_14 = arith.constant 0 : index
    %25 = vector.load %arg3[%c80, %c0_14] : memref<128x64xbf16, #tpu.memory_space<vmem>>, vector<32x16xbf16>
    %c2 = arith.constant 2 : index
    %c0_15 = arith.constant 0 : index
    %26 = vector.load %arg4[%c2, %c0_15] : memref<4x64xf32, #tpu.memory_space<vmem>>, vector<1x16xf32>
    %27 = arith.truncf %24 : vector<16x32xf32> to vector<16x32xbf16>
    %cst_16 = arith.constant dense<0.000000e+00> : vector<16x16xf32>
    %28 = tpu.matmul %27, %25, %cst_16 {dimension_numbers = #tpu.dot_dimension_numbers<[1], [0], [0], [1], [0, 0, 1, 1], [], []>} : vector<16x32xbf16>, vector<32x16xbf16>, vector<16x16xf32> -> vector<16x16xf32>
    %29 = vector.broadcast %26 : vector<1x16xf32> to vector<16x16xf32>
    %30 = arith.addf %28, %29 : vector<16x16xf32>
    %cst_17 = arith.constant 0.000000e+00 : f32
    %31 = vector.broadcast %cst_17 : f32 to vector<16x16xf32>
    %32 = arith.cmpf oge, %30, %31 : vector<16x16xf32>
    %cst_18 = arith.constant 0.00999999977 : f32
    %33 = vector.broadcast %cst_18 : f32 to vector<16x16xf32>
    %34 = arith.mulf %33, %30 : vector<16x16xf32>
    %35 = arith.select %32, %30, %34 : vector<16x16xi1>, vector<16x16xf32>
    %c112 = arith.constant 112 : index
    %c0_19 = arith.constant 0 : index
    %36 = vector.load %arg3[%c112, %c0_19] : memref<128x64xbf16, #tpu.memory_space<vmem>>, vector<1x16xbf16>
    %37 = arith.extf %36 : vector<1x16xbf16> to vector<1x16xf32>
    %c3 = arith.constant 3 : index
    %c0_20 = arith.constant 0 : index
    %38 = vector.load %arg4[%c3, %c0_20] : memref<4x64xf32, #tpu.memory_space<vmem>>, vector<1x1xf32>
    %39 = vector.broadcast %37 : vector<1x16xf32> to vector<16x16xf32>
    %40 = arith.mulf %35, %39 : vector<16x16xf32>
    %cst_21 = arith.constant dense<0.000000e+00> : vector<16xf32>
    %41 = vector.multi_reduction <add>, %40, %cst_21 [1] : vector<16x16xf32> to vector<16xf32>
    %42 = vector.shape_cast %41 : vector<16xf32> to vector<16x1xf32>
    %43 = vector.broadcast %38 : vector<1x1xf32> to vector<16x1xf32>
    %44 = arith.addf %42, %43 : vector<16x1xf32>
    %cst_22 = arith.constant 0.000000e+00 : f32
    %45 = vector.broadcast %cst_22 : f32 to vector<16x1xf32>
    %46 = arith.subf %45, %44 : vector<16x1xf32>
    %47 = math.exp %46 : vector<16x1xf32>
    %cst_23 = arith.constant 1.000000e+00 : f32
    %48 = vector.broadcast %cst_23 : f32 to vector<16x1xf32>
    %49 = arith.addf %48, %47 : vector<16x1xf32>
    %50 = tpu.reciprocal %49 : vector<16x1xf32> -> vector<16x1xf32>
    %51 = vector.extract_strided_slice %50 {offsets = [0, 0], sizes = [8, 1], strides = [1, 1]} : vector<16x1xf32> to vector<8x1xf32>
    %52 = vector.extract_strided_slice %50 {offsets = [8, 0], sizes = [8, 1], strides = [1, 1]} : vector<16x1xf32> to vector<8x1xf32>
    %53 = tpu.concatenate %51, %52 in 1 : vector<8x1xf32>, vector<8x1xf32> -> vector<8x2xf32>
    %c0_24 = arith.constant 0 : index
    %c0_25 = arith.constant 0 : index
    %54 = vector.load %arg5[%c0_24, %c0_25] : memref<8x2xf32, #tpu.memory_space<vmem>>, vector<8x2xf32>
    tpu.vector_store %arg5[%c0_24, %c0_25], %53 {strides = array<i32>} : memref<8x2xf32, #tpu.memory_space<vmem>>, vector<8x2xf32>,
    return
  }
  func.func @transform_0(%arg0: i32) -> (i32, i32) {
    %c0_i32 = arith.constant 0 : i32
    %c0_i32_0 = arith.constant 0 : i32
    return %arg0, %c0_i32 : i32, i32
  }
  func.func @transform_1(%arg0: i32) -> (i32, i32) {
    %c0_i32 = arith.constant 0 : i32
    %c0_i32_0 = arith.constant 0 : i32
    return %arg0, %c0_i32 : i32, i32
  }
  func.func @transform_2(%arg0: i32) -> (i32, i32) {
    %c0_i32 = arith.constant 0 : i32
    %c0_i32_0 = arith.constant 0 : i32
    %c0_i32_1 = arith.constant 0 : i32
    return %c0_i32, %c0_i32_0 : i32, i32
  }
  func.func @transform_3(%arg0: i32) -> (i32, i32) {
    %c0_i32 = arith.constant 0 : i32
    %c0_i32_0 = arith.constant 0 : i32
    %c0_i32_1 = arith.constant 0 : i32
    return %c0_i32, %c0_i32_0 : i32, i32
  }
  func.func @transform_4(%arg0: i32) -> (i32, i32) {
    %c0_i32 = arith.constant 0 : i32
    %c0_i32_0 = arith.constant 0 : i32
    return %arg0, %c0_i32 : i32, i32
  }
}

</mosaic_0001>

<llo_original>
// kernel: assess_forward.1
$region0: #{assess_forward.1}
  #allocation0 [shape = 'u32[]', space=smem, size = 0x4, offset = 0x4, fixed_abs, tag = 'smem constant byte address 0x4 - core index']
  #allocation1 [shape = 'u32[72,128]{1,0:T(1,128)}', space=vmem, size = 0x9000, scoped, tag = 'internal scratch']
  %s0 = inlined_call_operand.vmem [shape: f32[8,6], index: 0, kind: input, shape index: {}]
  %s1 = inlined_call_operand.vmem [shape: f32[8,6], index: 1, kind: input, shape index: {}]
  %s2 = inlined_call_operand.vmem [shape: bf16[128,64], index: 2, kind: input, shape index: {}]
  %s3 = inlined_call_operand.vmem [shape: f32[4,64], index: 3, kind: input, shape index: {}]
  %s4 = inlined_call_operand.vmem [shape: f32[8,2], index: 4, kind: output, shape index: {}]
  %s5 = sld [smem:[#allocation0]]
  $region26: #{assess_forward.1} parent=0
    _
  %s7 = ssub.s32 1, %s5
  %s8 = scalar_select 0, %s7, %s5
  // Predicated region
  $region2: #{assess_forward.1} parent=0 // pred_check
    _
  $region3: #{assess_forward.1} parent=0 // pred_check_branch
    %10 = sbr.rel (0) target = $region5
  $region4: #{assess_forward.1} parent=0 // pred_region
    _
  $region5: #{assess_forward.1} parent=0 // pred_fallthru
    _
  // Predicated region
  $region6: #{assess_forward.1} parent=0 // pred_check
    _
  $region7: #{assess_forward.1} parent=0 // pred_check_branch
    %12 = sbr.rel (0) target = $region9
  $region8: #{assess_forward.1} parent=0 // pred_region
    _
  $region9: #{assess_forward.1} parent=0 // pred_fallthru
    _
  // Predicated region
  $region10: #{assess_forward.1} parent=0 // pred_check
    _
  $region11: #{assess_forward.1} parent=0 // pred_check_branch
    %14 = sbr.rel (0) target = $region13
  $region12: #{assess_forward.1} parent=0 // pred_region
    _
  $region13: #{assess_forward.1} parent=0 // pred_fallthru
    _
  // Predicated region
  $region14: #{assess_forward.1} parent=0 // pred_check
    _
  $region15: #{assess_forward.1} parent=0 // pred_check_branch
    %16 = sbr.rel (0) target = $region17
  $region16: #{assess_forward.1} parent=0 // pred_region
    _
  $region17: #{assess_forward.1} parent=0 // pred_fallthru
    _
  %v18 = vld [vmem:[%s0] sm:$0xff]
  %v19 = vld [vmem:[%s1] sm:$0xff]
  %v20 = vld [vmem:[%s2] sm:$0x7]
  %v21 = vld [vmem:[%s3] sm:$0x1]
  %v22 = vpack.c.bf16 %v19, %v18
  %v23 = vperm.slane %v21, 0
  %vm24 = vcmask 48128
  %v26 = vsel %vm24, %v22, 0
  %vm28 = vcmask 1042432
  %v30 = vsel %vm28, %v20, 0
  %32 = vmatpush.bf16.msra.mxu0 0
  %33 = vmatpush.bf16.msra.mxu0 0
  %34 = vmatpush.bf16.msra.mxu0 0
  %35 = vmatpush.bf16.msra.mxu0 0
  %36 = vmatpush.bf16.msra.mxu0 0
  %37 = vmatpush.bf16.msra.mxu0 0
  %38 = vmatpush.bf16.msra.mxu0 0
  %39 = vmatpush.bf16.msra.mxu0 %v30
  %40 = vmatmul.bf16.gmra.mxu0 %v26
  %v41 = vpop.f32.mrf.mxu0
  %v42 = vadd.f32 %v23, %v41
  %v43 = vpop.f32.mrf.mxu0
  %v44 = vadd.f32 %v23, %v43
  %45 = vdwg.mxu0
  %vm46 = vcmp.ge.f32.partialorder %v42, 0.0
  %vm47 = vcmp.ge.f32.partialorder %v44, 0.0
  %v48 = vmul.f32 %v42, 0.01
  %v49 = vmul.f32 %v44, 0.01
  %v50 = vsel %vm46, %v42, %v48
  %v51 = vsel %vm47, %v44, %v49
  %v52 = vld [vmem:[%s2 + $0x8] sm:$0xf]
  %v53 = vld [vmem:[%s2 + $0xc] sm:$0xf]
  %v54 = vld [vmem:[%s2 + $0x10] sm:$0xf]
  %v55 = vld [vmem:[%s2 + $0x14] sm:$0xf]
  %v56 = vld [vmem:[%s2 + $0x18] sm:$0xf]
  %v57 = vld [vmem:[%s2 + $0x1c] sm:$0xf]
  %v58 = vld [vmem:[%s2 + $0x20] sm:$0xf]
  %v59 = vld [vmem:[%s2 + $0x24] sm:$0xf]
  %v60 = vld [vmem:[%s3 + $0x1] sm:$0x1]
  %v61 = vpack.c.bf16 %v51, %v50
  %v62 = vperm.slane %v60, 0
  %v71 = vunpack.c.l.b16 %v52
  %v72 = vunpack.c.l.b16 %v53
  %v73 = vunpack.c.l.b16 %v54
  %v74 = vunpack.c.l.b16 %v55
  %v75 = vunpack.c.l.b16 %v56
  %v76 = vunpack.c.l.b16 %v57
  %v77 = vunpack.c.l.b16 %v58
  %v78 = vunpack.c.l.b16 %v59
  %v79 = vpack.c.b16 %v72, %v71
  %v80 = vpack.c.b16 %v74, %v73
  %v81 = vpack.c.b16 %v76, %v75
  %v82 = vpack.c.b16 %v78, %v77
  %vm87 = vcmask 523264
  %v89 = vsel %vm87, %v61, 0
  %91 = vmatpush.bf16.msra.mxu0 0
  %92 = vmatpush.bf16.msra.mxu0 0
  %93 = vmatpush.bf16.msra.mxu0 0
  %94 = vmatpush.bf16.msra.mxu0 0
  %95 = vmatpush.bf16.msra.mxu0 %v82
  %96 = vmatpush.bf16.msra.mxu0 %v81
  %97 = vmatpush.bf16.msra.mxu0 %v80
  %98 = vmatpush.bf16.msra.mxu0 %v79
  %99 = vmatmul.bf16.gmra.mxu0 %v89
  %v100 = vpop.f32.mrf.mxu0
  %v101 = vadd.f32 %v62, %v100
  %v102 = vpop.f32.mrf.mxu0
  %v103 = vadd.f32 %v62, %v102
  %104 = vdwg.mxu0
  %vm105 = vcmp.ge.f32.partialorder %v101, 0.0
  %vm106 = vcmp.ge.f32.partialorder %v103, 0.0
  %v107 = vmul.f32 %v101, 0.01
  %v108 = vmul.f32 %v103, 0.01
  %v109 = vsel %vm105, %v101, %v107
  %v110 = vsel %vm106, %v103, %v108
  %v111 = vld [vmem:[%s2 + $0x28] sm:$0xf]
  %v112 = vld [vmem:[%s2 + $0x2c] sm:$0xf]
  %v113 = vld [vmem:[%s2 + $0x30] sm:$0xf]
  %v114 = vld [vmem:[%s2 + $0x34] sm:$0xf]
  %v115 = vld [vmem:[%s3 + $0x2] sm:$0x1]
  %v116 = vpack.c.bf16 %v110, %v109
  %v117 = vperm.slane %v115, 0
  %v122 = vunpack.c.l.b16 %v111
  %v123 = vunpack.c.l.b16 %v112
  %v124 = vunpack.c.l.b16 %v113
  %v125 = vunpack.c.l.b16 %v114
  %v126 = vpack.c.b16 %v123, %v122
  %v127 = vpack.c.b16 %v125, %v124
  %vm130 = vcmask 261120
  %v132 = vsel %vm130, %v116, 0
  %134 = vmatpush.bf16.msra.mxu0 0
  %135 = vmatpush.bf16.msra.mxu0 0
  %136 = vmatpush.bf16.msra.mxu0 0
  %137 = vmatpush.bf16.msra.mxu0 0
  %138 = vmatpush.bf16.msra.mxu0 0
  %139 = vmatpush.bf16.msra.mxu0 0
  %140 = vmatpush.bf16.msra.mxu0 %v127
  %141 = vmatpush.bf16.msra.mxu0 %v126
  %142 = vmatmul.bf16.gmra.mxu0 %v132
  %v143 = vpop.f32.mrf.mxu0
  %v144 = vadd.f32 %v117, %v143
  %v145 = vpop.f32.mrf.mxu0
  %v146 = vadd.f32 %v117, %v145
  %147 = vdwg.mxu0
  %vm148 = vcmp.ge.f32.partialorder %v144, 0.0
  %vm149 = vcmp.ge.f32.partialorder %v146, 0.0
  %v150 = vmul.f32 %v144, 0.01
  %v151 = vmul.f32 %v146, 0.01
  %v152 = vsel %vm148, %v144, %v150
  %v153 = vsel %vm149, %v146, %v151
  %v154 = vld [vmem:[%s2 + $0x38] sm:$0x1]
  %v155 = vunpack.c.l.bf16 %v154
  %v156 = vld [vmem:[%s3 + $0x3] sm:$0x1]
  %v157 = vperm.slane %v155, 0
  %v158 = vmul.f32 %v152, %v157
  %v159 = vmul.f32 %v153, %v157
  %vm160 = vcmask 130048
  %v161 = vsel %vm160, %v158, 0.0
  %162 = vadd.xlane.f32.xlu0 %v161
  %v163 = vpop.xlane.xlu0 %162
  %v164 = vsel %vm160, %v159, 0.0
  %165 = vadd.xlane.f32.xlu0 %v164
  %v166 = vpop.xlane.xlu0 %165
  %v167 = vperm.slane %v156, 0
  %v168 = vadd.f32 %v163, %v167
  %v169 = vadd.f32 %v166, %v167
  %v170 = vsub.f32 0.0, %v168
  %v171 = vsub.f32 0.0, %v169
  %v172 = vmul.f32 %v170, 1.442695
  %v173 = vpow.pop %v172
  %v174 = vmul.f32 %v171, 1.442695
  %v175 = vpow.pop %v174
  %v176 = vadd.f32 %v173, 1.0
  %v177 = vadd.f32 %v175, 1.0
  %v178 = vrcp.pop %v176
  %v179 = vmul.f32 %v176, %v178
  %v180 = vsub.f32 1.0, %v179
  %v181 = vmul.f32 %v178, %v180
  %v182 = vadd.f32 %v178, %v181
  %vm183 = vweird.f32 %v176
  %vm184 = vweird.f32 %v178
  %vm185 = vmor %vm183, %vm184
  %v186 = vsel %vm185, %v178, %v182
  %v187 = vand.u32 2147483647, %v176
  %vm188 = vcmp.eq.f32.partialorder %v187, 8.507059e+37
  %v189 = vand.u32 %v176, 2147483648
  %v190 = vor.u32 1.1754944e-38, %v189
  %v191 = vsel %vm188, %v190, %v186
  %v192 = vrcp.pop %v177
  %v193 = vmul.f32 %v177, %v192
  %v194 = vsub.f32 1.0, %v193
  %v195 = vmul.f32 %v192, %v194
  %v196 = vadd.f32 %v192, %v195
  %vm197 = vweird.f32 %v177
  %vm198 = vweird.f32 %v192
  %vm199 = vmor %vm197, %vm198
  %v200 = vsel %vm199, %v192, %v196
  %v201 = vand.u32 2147483647, %v177
  %vm202 = vcmp.eq.f32.partialorder %v201, 8.507059e+37
  %v203 = vand.u32 %v177, 2147483648
  %v204 = vor.u32 1.1754944e-38, %v203
  %v205 = vsel %vm202, %v204, %v200
  %207 = vrot.lane.b32.xlu0 %v205, 1
  %v208 = vpop.permute.xlu0 %207
  %vm210 = vcmask 7168
  %v211 = vsel %vm210, %v191, %v208
  %vm212 = vcmask 15360
  %213 = vst.msk [vmem:[%s4] sm:$0xff] %vm212, %v211
  // Predicated region
  $region18: #{assess_forward.1} parent=0 // pred_check
    _
  $region19: #{assess_forward.1} parent=0 // pred_check_branch
    %215 = sbr.rel (0) target = $region21
  $region20: #{assess_forward.1} parent=0 // pred_region
    _
  $region21: #{assess_forward.1} parent=0 // pred_fallthru
    _
  // Predicated region
  $region22: #{assess_forward.1} parent=0 // pred_check
    _
  $region23: #{assess_forward.1} parent=0 // pred_check_branch
    %217 = sbr.rel (0) target = $region25
  $region24: #{assess_forward.1} parent=0 // pred_region
    _
  $region25: #{assess_forward.1} parent=0 // pred_fallthru
    _

</llo_original>
